<compile_context>
chip_gen: v7x
topology: tpu7x:2x2x1
jax: 0.10.0
libtpu: 0.0.40
codegen_flags: <defaults>
</compile_context>

<pallas_src>
import functools
import math

import jax
import jax.numpy as jnp
from jax.experimental import pallas as pl
from jax.experimental.pallas import tpu as pltpu


def _round_up(n, m):
    return ((n + m - 1) // m) * m


def _complex_ln_kernel(x_ref, g_ref, b_ref, y_ref, *, eps, inv_h):
    """LayerNorm over an interleaved real/imag slab.

    x_ref: (block_rows, 2H) f32, lane 2j = real feature j, 2j+1 = imag.
    g_ref/b_ref: (1, 2H) interleaved per-part affine params (VMEM-resident).
    Two-pass stats (mean, then centered variance) per lane parity; everything
    stays in vregs so the second pass costs zero HBM traffic.
    """
    x = x_ref[...]                                        # (bm, 2H) f32
    lane = jax.lax.broadcasted_iota(jnp.int32, x.shape, dimension=1)
    is_real = (lane & 1) == 0
    zero = jnp.zeros_like(x)

    sum_r = jnp.sum(jnp.where(is_real, x, zero), axis=-1, keepdims=True)
    sum_i = jnp.sum(jnp.where(is_real, zero, x), axis=-1, keepdims=True)
    mean = jnp.where(is_real, sum_r * inv_h, sum_i * inv_h)

    d = x - mean
    d2 = d * d
    var_r = jnp.sum(jnp.where(is_real, d2, zero), axis=-1, keepdims=True) * inv_h
    var_i = jnp.sum(jnp.where(is_real, zero, d2), axis=-1, keepdims=True) * inv_h
    inv = jax.lax.rsqrt(jnp.where(is_real, var_r, var_i) + eps)

    y_ref[...] = d * inv * g_ref[...] + b_ref[...]


def _vmem_plan():
    """Return (pipeline_budget_bytes, vmem_limit_bytes) per TPU generation."""
    try:
        vmem = pltpu.get_tpu_info().vmem_capacity_bytes
    except Exception:
        vmem = None
    if vmem is not None and vmem >= 96 * 1024 * 1024:
        # v5e / v6e: 128 MiB physical VMEM -> bigger tiles amortize the
        # ~0.35us per-grid-step overhead on this purely mem-bound kernel.
        return 32 * 1024 * 1024, 64 * 1024 * 1024
    # v7x (64 MiB per TC) or unknown: stay under the 32 MiB scoped default.
    return 16 * 1024 * 1024, 32 * 1024 * 1024


def complex_layer_norm(x, gamma_r, beta_r, gamma_i, beta_i, eps=1e-5,
                       *, max_block_rows=2048):
    """Pallas implementation of ComplexLayerNorm.forward for complex input x."""
    orig_shape = x.shape
    H = orig_shape[-1]
    rows = math.prod(orig_shape[:-1]) if len(orig_shape) > 1 else 1
    W = 2 * H

    # Interleaved f32 slab (one fused XLA pass in, one out).
    # TODO(synk): lax.bitcast_convert_type rejects complex dtypes, so these
    # two passes can't currently be replaced by zero-copy bitcasts.
    xr = jnp.real(x).astype(jnp.float32)
    xi = jnp.imag(x).astype(jnp.float32)
    x2 = jnp.stack([xr, xi], axis=-1).reshape(rows, W)

    g2 = jnp.stack([gamma_r, gamma_i], axis=-1).astype(jnp.float32).reshape(1, W)
    b2 = jnp.stack([beta_r, beta_i], axis=-1).astype(jnp.float32).reshape(1, W)

    pipeline_budget, vmem_limit = _vmem_plan()

    # Row-tile sizing: big enough to hide per-step overhead, within the VMEM
    # budget (in + out streams, double-buffered), capped so the grid keeps
    # >= ~8 steps for megacore sharding + pipeline overlap.
    row_bytes = _round_up(W, 128) * 4
    max_rows_by_vmem = max(8, pipeline_budget // (2 * 2 * row_bytes))
    target_rows = _round_up(pl.cdiv(rows, 8), 8)
    block_rows = max(8, min(max_block_rows,
                            (max_rows_by_vmem // 8) * 8,
                            target_rows))
    if rows < 8:
        block_rows = rows  # block dim == full array dim satisfies (8,128) rule
    grid = (pl.cdiv(rows, block_rows),)

    x_spec = pl.BlockSpec((block_rows, W), lambda i: (i, 0))
    p_spec = pl.BlockSpec((1, W), lambda i: (0, 0))   # VMEM-resident params

    # No jnp.pad: the ragged tail block's OOB rows read unspecified data, but
    # every statistic is strictly per-row and OOB writes are dropped.
    y2 = pl.pallas_call(
        functools.partial(_complex_ln_kernel, eps=eps, inv_h=1.0 / H),
        out_shape=jax.ShapeDtypeStruct((rows, W), jnp.float32),
        grid_spec=pltpu.PrefetchScalarGridSpec(
            num_scalar_prefetch=0,
            grid=grid,
            in_specs=[x_spec, p_spec, p_spec],
            out_specs=x_spec,
        ),
        compiler_params=pltpu.CompilerParams(
            dimension_semantics=("parallel",),
            vmem_limit_bytes=vmem_limit,
        ),
    )(x2, g2, b2)

    y = y2.reshape(*orig_shape, 2)
    return jax.lax.complex(y[..., 0], y[..., 1])


def _reference(x, gamma_r, beta_r, gamma_i, beta_i, eps=1e-5):
    """Pure-JAX reference matching torch semantics (two-pass LayerNorm)."""
    def _ln(v, g, b):
        mean = jnp.mean(v, axis=-1, keepdims=True)
        var = jnp.mean((v - mean) ** 2, axis=-1, keepdims=True)
        return (v - mean) * jax.lax.rsqrt(var + eps) * g + b
    return jax.lax.complex(_ln(jnp.real(x), gamma_r, beta_r),
                           _ln(jnp.imag(x), gamma_i, beta_i))


if __name__ == "__main__":
    # Small shapes consistent with the module: (batch=2, seq=8, hidden=32),
    # normalized_shape = 32 (LayerNorm over the last dim).
    B, S, H = 2, 8, 32
    key = jax.random.PRNGKey(0)
    k_re, k_im, k_gr, k_br, k_gi, k_bi = jax.random.split(key, 6)

    x_re = jax.random.normal(k_re, (B, S, H), dtype=jnp.float32)
    x_im = jax.random.normal(k_im, (B, S, H), dtype=jnp.float32)
    x = jax.lax.complex(x_re, x_im)  # complex64

    # nn.LayerNorm weight/bias shapes = (H,). PyTorch inits weight=1, bias=0;
    # perturb deterministically so the affine path is actually exercised.
    gamma_r = 1.0 + 0.1 * jax.random.normal(k_gr, (H,), dtype=jnp.float32)
    beta_r = 0.1 * jax.random.normal(k_br, (H,), dtype=jnp.float32)
    gamma_i = 1.0 + 0.1 * jax.random.normal(k_gi, (H,), dtype=jnp.float32)
    beta_i = 0.1 * jax.random.normal(k_bi, (H,), dtype=jnp.float32)

    out = jax.block_until_ready(
        complex_layer_norm(x, gamma_r, beta_r, gamma_i, beta_i))
    ref = _reference(x, gamma_r, beta_r, gamma_i, beta_i)

    assert out.shape == x.shape and out.dtype == jnp.complex64
    assert jnp.allclose(jnp.real(out), jnp.real(ref), atol=1e-5, rtol=1e-5)
    assert jnp.allclose(jnp.imag(out), jnp.imag(ref), atol=1e-5, rtol=1e-5)

    print("KERNEL_OK")
</pallas_src>

<mosaic_0001>
module attributes {stable_mosaic.version = 11 : i64} {
  func.func @_complex_ln_kernel(%arg0: i32, %arg1: memref<8x64xf32, #tpu.memory_space<vmem>>, %arg2: memref<1x64xf32, #tpu.memory_space<vmem>>, %arg3: memref<1x64xf32, #tpu.memory_space<vmem>>, %arg4: memref<8x64xf32, #tpu.memory_space<vmem>>) attributes {dimension_semantics = [#tpu.dimension_semantics<parallel>], iteration_bounds = array<i64: 2>, scalar_prefetch = 0 : i64, scratch_operands = 0 : i64, tpu.core_type = #tpu.core_type<tc>, window_params = [{transform_indices = @transform_0, window_bounds = array<i64: 8, 64>}, {pipeline_mode = #tpu.pipeline_mode<synchronous>, transform_indices = @transform_1, window_bounds = array<i64: 1, 64>}, {pipeline_mode = #tpu.pipeline_mode<synchronous>, transform_indices = @transform_2, window_bounds = array<i64: 1, 64>}, {transform_indices = @transform_3, window_bounds = array<i64: 8, 64>}]} {
    %c0 = arith.constant 0 : index
    %c0_0 = arith.constant 0 : index
    %0 = vector.load %arg1[%c0, %c0_0] : memref<8x64xf32, #tpu.memory_space<vmem>>, vector<8x64xf32>
    %1 = tpu.iota {dimensions = array<i32: 1>} : vector<8x64xi32>
    %c1_i32 = arith.constant 1 : i32
    %2 = vector.broadcast %c1_i32 : i32 to vector<8x64xi32>
    %3 = arith.andi %1, %2 : vector<8x64xi32>
    %c0_i32 = arith.constant 0 : i32
    %4 = vector.broadcast %c0_i32 : i32 to vector<8x64xi32>
    %5 = arith.cmpi eq, %3, %4 : vector<8x64xi32>
    %cst = arith.constant 0.000000e+00 : f32
    %6 = vector.broadcast %cst : f32 to vector<8x64xf32>
    %7 = arith.select %5, %0, %6 : vector<8x64xi1>, vector<8x64xf32>
    %cst_1 = arith.constant dense<0.000000e+00> : vector<8xf32>
    %8 = vector.multi_reduction <add>, %7, %cst_1 [1] : vector<8x64xf32> to vector<8xf32>
    %9 = vector.shape_cast %8 : vector<8xf32> to vector<8x1xf32>
    %10 = arith.select %5, %6, %0 : vector<8x64xi1>, vector<8x64xf32>
    %cst_2 = arith.constant dense<0.000000e+00> : vector<8xf32>
    %11 = vector.multi_reduction <add>, %10, %cst_2 [1] : vector<8x64xf32> to vector<8xf32>
    %12 = vector.shape_cast %11 : vector<8xf32> to vector<8x1xf32>
    %cst_3 = arith.constant 3.125000e-02 : f32
    %13 = vector.broadcast %cst_3 : f32 to vector<8x1xf32>
    %14 = arith.mulf %9, %13 : vector<8x1xf32>
    %cst_4 = arith.constant 3.125000e-02 : f32
    %15 = vector.broadcast %cst_4 : f32 to vector<8x1xf32>
    %16 = arith.mulf %12, %15 : vector<8x1xf32>
    %17 = vector.shape_cast %14 : vector<8x1xf32> to vector<8x1xf32>
    %18 = vector.broadcast %17 : vector<8x1xf32> to vector<8x64xf32>
    %19 = vector.shape_cast %16 : vector<8x1xf32> to vector<8x1xf32>
    %20 = vector.broadcast %19 : vector<8x1xf32> to vector<8x64xf32>
    %21 = arith.select %5, %18, %20 : vector<8x64xi1>, vector<8x64xf32>
    %22 = arith.subf %0, %21 : vector<8x64xf32>
    %23 = arith.mulf %22, %22 : vector<8x64xf32>
    %24 = arith.select %5, %23, %6 : vector<8x64xi1>, vector<8x64xf32>
    %cst_5 = arith.constant dense<0.000000e+00> : vector<8xf32>
    %25 = vector.multi_reduction <add>, %24, %cst_5 [1] : vector<8x64xf32> to vector<8xf32>
    %26 = vector.shape_cast %25 : vector<8xf32> to vector<8x1xf32>
    %cst_6 = arith.constant 3.125000e-02 : f32
    %27 = vector.broadcast %cst_6 : f32 to vector<8x1xf32>
    %28 = arith.mulf %26, %27 : vector<8x1xf32>
    %29 = arith.select %5, %6, %23 : vector<8x64xi1>, vector<8x64xf32>
    %cst_7 = arith.constant dense<0.000000e+00> : vector<8xf32>
    %30 = vector.multi_reduction <add>, %29, %cst_7 [1] : vector<8x64xf32> to vector<8xf32>
    %31 = vector.shape_cast %30 : vector<8xf32> to vector<8x1xf32>
    %cst_8 = arith.constant 3.125000e-02 : f32
    %32 = vector.broadcast %cst_8 : f32 to vector<8x1xf32>
    %33 = arith.mulf %31, %32 : vector<8x1xf32>
    %34 = vector.shape_cast %28 : vector<8x1xf32> to vector<8x1xf32>
    %35 = vector.broadcast %34 : vector<8x1xf32> to vector<8x64xf32>
    %36 = vector.shape_cast %33 : vector<8x1xf32> to vector<8x1xf32>
    %37 = vector.broadcast %36 : vector<8x1xf32> to vector<8x64xf32>
    %38 = arith.select %5, %35, %37 : vector<8x64xi1>, vector<8x64xf32>
    %cst_9 = arith.constant 9.99999974E-6 : f32
    %39 = vector.broadcast %cst_9 : f32 to vector<8x64xf32>
    %40 = arith.addf %38, %39 : vector<8x64xf32>
    %41 = math.rsqrt %40 : vector<8x64xf32>
    %42 = arith.mulf %22, %41 : vector<8x64xf32>
    %c0_10 = arith.constant 0 : index
    %c0_11 = arith.constant 0 : index
    %43 = vector.load %arg2[%c0_10, %c0_11] : memref<1x64xf32, #tpu.memory_space<vmem>>, vector<1x64xf32>
    %44 = vector.broadcast %43 : vector<1x64xf32> to vector<8x64xf32>
    %45 = arith.mulf %42, %44 : vector<8x64xf32>
    %c0_12 = arith.constant 0 : index
    %c0_13 = arith.constant 0 : index
    %46 = vector.load %arg3[%c0_12, %c0_13] : memref<1x64xf32, #tpu.memory_space<vmem>>, vector<1x64xf32>
    %47 = vector.broadcast %46 : vector<1x64xf32> to vector<8x64xf32>
    %48 = arith.addf %45, %47 : vector<8x64xf32>
    %c0_14 = arith.constant 0 : index
    %c0_15 = arith.constant 0 : index
    %49 = vector.load %arg4[%c0_14, %c0_15] : memref<8x64xf32, #tpu.memory_space<vmem>>, vector<8x64xf32>
    tpu.vector_store %arg4[%c0_14, %c0_15], %48 {strides = array<i32>} : memref<8x64xf32, #tpu.memory_space<vmem>>, vector<8x64xf32>,
    return
  }
  func.func @transform_0(%arg0: i32) -> (i32, i32) {
    %c0_i32 = arith.constant 0 : i32
    %c0_i32_0 = arith.constant 0 : i32
    return %arg0, %c0_i32 : i32, i32
  }
  func.func @transform_1(%arg0: i32) -> (i32, i32) {
    %c0_i32 = arith.constant 0 : i32
    %c0_i32_0 = arith.constant 0 : i32
    %c0_i32_1 = arith.constant 0 : i32
    return %c0_i32, %c0_i32_0 : i32, i32
  }
  func.func @transform_2(%arg0: i32) -> (i32, i32) {
    %c0_i32 = arith.constant 0 : i32
    %c0_i32_0 = arith.constant 0 : i32
    %c0_i32_1 = arith.constant 0 : i32
    return %c0_i32, %c0_i32_0 : i32, i32
  }
  func.func @transform_3(%arg0: i32) -> (i32, i32) {
    %c0_i32 = arith.constant 0 : i32
    %c0_i32_0 = arith.constant 0 : i32
    return %arg0, %c0_i32 : i32, i32
  }
}

</mosaic_0001>

<llo_original>
// kernel: tpu_custom_call.1
$region0: #{tpu_custom_call.1}
  #allocation0 [shape = 'u32[]', space=smem, size = 0x4, offset = 0x4, fixed_abs, tag = 'smem constant byte address 0x4 - core index']
  #allocation1 [shape = 'u32[144,128]{1,0:T(1,128)}', space=vmem, size = 0x12000, scoped, tag = 'internal scratch']
  %s0 = inlined_call_operand.hbm [shape: f32[16,64], index: 0, kind: input, shape index: {}]
  %s1 = inlined_call_operand.vmem [shape: f32[1,64], index: 1, kind: input, shape index: {}]
  %s2 = inlined_call_operand.vmem [shape: f32[1,64], index: 2, kind: input, shape index: {}]
  %s3 = inlined_call_operand.hbm [shape: f32[16,64], index: 3, kind: output, shape index: {}]
  %s4 = sld [smem:[#allocation0]]
  $region49: #{tpu_custom_call.1} parent=0
    _
  %s6 = ssub.s32 1, %s4
  %s7 = scalar_select 0, %s6, %s4
  $region1: #{tpu_custom_call.1} parent=0
    #allocation2 [shape = 'u8[8192]{0}', space=vmem, size = 0x2000, scoped, tag = 'input window, operand 0']
    #allocation3 [shape = 's32[2]{0}', space=sflag, size = 0x8, scoped, tag = 'scoped memory for tpu_custom_call.1']
    #allocation4 [shape = 's32[2]{0}', space=sflag, size = 0x8, scoped, tag = 'scoped memory for tpu_custom_call.1']
    #allocation5 [shape = 'u8[8192]{0}', space=vmem, size = 0x2000, scoped, tag = 'output window, operand 0']
    %8 = vsyncpa [#allocation3], 0
    %s9 = scalar_lea.sflag [#allocation3], 1
    %10 = vsyncpa %s9, 0
    %11 = vsyncpa [#allocation4], 0
    %s12 = scalar_lea.sflag [#allocation4], 1
    %13 = vsyncpa %s12, 0
    loop: start=0, step=1, limit=4
    $region2: #{tpu_custom_call.1} parent=1 // loop_pre_header
      _
    $region3: #{tpu_custom_call.1} parent=1 // loop_header
      %s15 = sphi 0, %s19
      %p16 = scmp.ge.s32.totalorder %s15, 4
      %s25 = sphi 0, %s27
      %s28 = sphi 0, %s25
      %s29 = sphi 0, %s28
      %s45 = sphi 0, %s29
      %s49 = sphi 0, %s49
      %s51 = sphi 0, %s49
      %s52 = sphi 0, %s51
      %s66 = sphi 0, %s52
      %s70 = sphi 0, %s70
      %s72 = sphi 0, %s70
      %s73 = sphi 0, %s72
      %s87 = sphi 0, %s73
      %s93 = sphi 0, %s95
      %s96 = sphi 0, %s93
      %s97 = sphi 0, %s96
      %s113 = sphi 0, %s97
    $region4: #{tpu_custom_call.1} parent=1 // loop_header_branch
      %18 = sbr.rel (%p16) target = $region8
    $region5: #{tpu_custom_call.1} parent=1 // loop_body
      %s20 = ssub.s32 %s15, 1
      %s21 = ssub.s32 %s15, 2
      %s22 = sadd.s32 %s15, 1
      %s23 = ssub.s32 %s15, %s22
      %p24 = scmp.eq.s32.totalorder %s23, 0
      %s26 = sadd.s32 %s25, 1
      %s27 = scalar_select %p24, %s25, %s26
      %p30 = pneg %p24
      %p31 = scmp.eq.s32.totalorder %s15, 1
      %p32 = por %p30, %p31
      %p33 = scmp.ne.s32.totalorder %s25, %s28
      %p34 = scmp.eq.s32.totalorder %s15, 0
      %p35 = por %p33, %p34
      %p36 = scmp.ne.s32.totalorder %s25, %s28
      %p37 = scmp.eq.s32.totalorder %s20, 1
      %p38 = por %p36, %p37
      %p39 = scmp.ne.s32.totalorder %s28, %s29
      %p40 = scmp.eq.s32.totalorder %s20, 0
      %p41 = por %p39, %p40
      %p42 = scmp.ne.s32.totalorder %s28, %s29
      %p43 = scmp.eq.s32.totalorder %s21, 1
      %p44 = por %p42, %p43
      %p46 = scmp.ne.s32.totalorder %s29, %s45
      %p47 = scmp.eq.s32.totalorder %s21, 0
      %p48 = por %p46, %p47
      %s50 = sadd.s32 %s49, 1
      %p53 = scmp.eq.s32.totalorder %s15, 1
      %p54 = scmp.ne.s32.totalorder %s49, %s51
      %p55 = scmp.eq.s32.totalorder %s15, 0
      %p56 = por %p54, %p55
      %p57 = scmp.ne.s32.totalorder %s49, %s51
      %p58 = scmp.eq.s32.totalorder %s20, 1
      %p59 = por %p57, %p58
      %p60 = scmp.ne.s32.totalorder %s51, %s52
      %p61 = scmp.eq.s32.totalorder %s20, 0
      %p62 = por %p60, %p61
      %p63 = scmp.ne.s32.totalorder %s51, %s52
      %p64 = scmp.eq.s32.totalorder %s21, 1
      %p65 = por %p63, %p64
      %p67 = scmp.ne.s32.totalorder %s52, %s66
      %p68 = scmp.eq.s32.totalorder %s21, 0
      %p69 = por %p67, %p68
      %s71 = sadd.s32 %s70, 1
      %p74 = scmp.eq.s32.totalorder %s15, 1
      %p75 = scmp.ne.s32.totalorder %s70, %s72
      %p76 = scmp.eq.s32.totalorder %s15, 0
      %p77 = por %p75, %p76
      %p78 = scmp.ne.s32.totalorder %s70, %s72
      %p79 = scmp.eq.s32.totalorder %s20, 1
      %p80 = por %p78, %p79
      %p81 = scmp.ne.s32.totalorder %s72, %s73
      %p82 = scmp.eq.s32.totalorder %s20, 0
      %p83 = por %p81, %p82
      %p84 = scmp.ne.s32.totalorder %s72, %s73
      %p85 = scmp.eq.s32.totalorder %s21, 1
      %p86 = por %p84, %p85
      %p88 = scmp.ne.s32.totalorder %s73, %s87
      %p89 = scmp.eq.s32.totalorder %s21, 0
      %p90 = por %p88, %p89
      %s91 = ssub.s32 %s15, %s22
      %p92 = scmp.eq.s32.totalorder %s91, 0
      %s94 = sadd.s32 %s93, 1
      %s95 = scalar_select %p92, %s93, %s94
      %p98 = pneg %p92
      %p99 = scmp.eq.s32.totalorder %s15, 1
      %p100 = por %p98, %p99
      %p101 = scmp.ne.s32.totalorder %s93, %s96
      %p102 = scmp.eq.s32.totalorder %s15, 0
      %p103 = por %p101, %p102
      %p104 = scmp.ne.s32.totalorder %s93, %s96
      %p105 = scmp.eq.s32.totalorder %s20, 1
      %p106 = por %p104, %p105
      %p107 = scmp.ne.s32.totalorder %s96, %s97
      %p108 = scmp.eq.s32.totalorder %s20, 0
      %p109 = por %p107, %p108
      %p110 = scmp.ne.s32.totalorder %s96, %s97
      %p111 = scmp.eq.s32.totalorder %s21, 1
      %p112 = por %p110, %p111
      %p114 = scmp.ne.s32.totalorder %s97, %s113
      %p115 = scmp.eq.s32.totalorder %s21, 0
      %p116 = por %p114, %p115
      %p117 = scmp.le.s32.totalorder 1, %s15
      %p118 = scmp.lt.s32.totalorder %s15, 3
      %p119 = pnand %p117, %p118
      %p120 = pneg %p119
      // Predicated region
      $region9: #{tpu_custom_call.1} parent=5 // pred_check
        _
      $region10: #{tpu_custom_call.1} parent=5 // pred_check_branch
        %122 = sbr.rel (%p119) target = $region12
      $region11: #{tpu_custom_call.1} parent=5 // pred_region
        %s123 = ssub.s32 %s15, 1
        // Predicated region
        $region13: #{tpu_custom_call.1} parent=11 // pred_check
          %p124 = pneg %p62
        $region14: #{tpu_custom_call.1} parent=11 // pred_check_branch
          %126 = sbr.rel (%p124) target = $region16
        $region15: #{tpu_custom_call.1} parent=11 // pred_region
          _
        $region16: #{tpu_custom_call.1} parent=11 // pred_fallthru
          _
        // Predicated region
        $region17: #{tpu_custom_call.1} parent=11 // pred_check
          %p127 = pneg %p83
        $region18: #{tpu_custom_call.1} parent=11 // pred_check_branch
          %129 = sbr.rel (%p127) target = $region20
        $region19: #{tpu_custom_call.1} parent=11 // pred_region
          _
        $region20: #{tpu_custom_call.1} parent=11 // pred_fallthru
          _
      $region12: #{tpu_custom_call.1} parent=5 // pred_fallthru
        _
      %p130 = scmp.lt.s32.totalorder %s15, 2
      // Predicated region
      $region21: #{tpu_custom_call.1} parent=5 // pred_check
        %p131 = pneg %p130
      $region22: #{tpu_custom_call.1} parent=5 // pred_check_branch
        %133 = sbr.rel (%p131) target = $region24
      $region23: #{tpu_custom_call.1} parent=5 // pred_region
        // Predicated region
        $region25: #{tpu_custom_call.1} parent=23 // pred_check
          %p134 = pneg %p35
        $region26: #{tpu_custom_call.1} parent=23 // pred_check_branch
          %136 = sbr.rel (%p134) target = $region28
        $region27: #{tpu_custom_call.1} parent=23 // pred_region
          %s137 = sand.u32 %s25, 1
          %s138 = scalar_lea.sflag [#allocation3], %s137
          %s139 = sand.u32 %s25, 1
          %s140 = smul.addr %s139, 8
          %s141 = scalar_lea.vmem [#allocation2], %s140
          %s143 = ssub.s32 128, 128
          %144 = vsyncadd %s138, %s143
          %s145 = smul.addr %s15, 128
          %s146 = scalar_lea.hbm %s0, %s145
          %s148 = sshll.u32 %s141, 4
          %s149 = int_to_ptr.vmem [resolvable:$true] %s148
          %151 = dma.hbm_to_vmem [thread:$0]  %s146, 128, %s149, %s138
        $region28: #{tpu_custom_call.1} parent=23 // pred_fallthru
          _
      $region24: #{tpu_custom_call.1} parent=5 // pred_fallthru
        _
      %p152 = scmp.le.s32.totalorder 1, %s15
      %p153 = scmp.lt.s32.totalorder %s15, 3
      %p154 = pnand %p152, %p153
      %p155 = pneg %p154
      // Predicated region
      $region29: #{tpu_custom_call.1} parent=5 // pred_check
        _
      $region30: #{tpu_custom_call.1} parent=5 // pred_check_branch
        %157 = sbr.rel (%p154) target = $region32
      $region31: #{tpu_custom_call.1} parent=5 // pred_region
        %s158 = ssub.s32 %s15, 1
        %s159 = sand.u32 %s28, 1
        %s160 = scalar_lea.sflag [#allocation3], %s159
        %s161 = sand.u32 %s28, 1
        %s162 = smul.addr %s161, 8
        %s163 = scalar_lea.vmem [#allocation2], %s162
        // Predicated region
        $region33: #{tpu_custom_call.1} parent=31 // pred_check
          %p164 = pneg %p41
        $region34: #{tpu_custom_call.1} parent=31 // pred_check_branch
          %166 = sbr.rel (%p164) target = $region36
        $region35: #{tpu_custom_call.1} parent=31 // pred_region
          %167 = dma.done %s160, 128
        $region36: #{tpu_custom_call.1} parent=31 // pred_fallthru
          _
        %s168 = sand.u32 %s28, 1
        %s169 = scalar_lea.sflag [#allocation3], %s168
        %s170 = sand.u32 %s28, 1
        %s171 = smul.addr %s170, 8
        %s172 = scalar_lea.vmem [#allocation2], %s171
        %p173 = pneg %p41
        %p174 = pneg %p38
        %p175 = pneg %p62
        %p176 = pneg %p59
        %p177 = pneg %p83
        %p178 = pneg %p80
        %p179 = pneg %p109
        %p180 = pneg %p106
        %s181 = sand.u32 %s96, 1
        %s182 = scalar_lea.sflag [#allocation4], %s181
        %s183 = sand.u32 %s96, 1
        %s184 = smul.addr %s183, 8
        %s185 = scalar_lea.vmem [#allocation5], %s184
        %v186 = vld [vmem:[%s163] sm:$0xff]
        %v187 = vlaneseq
        %v188 = vand.u32 %v187, 127
        %v189 = vand.u32 %v188, 1
        %vm190 = vcmp.eq.s32.totalorder %v189, 0
        %v191 = vsel %vm190, %v186, 0.0
        %vm192 = vcmask 523264
        %v193 = vsel %vm192, %v191, 0.0
        %194 = vadd.xlane.f32.xlu0 %v193
        %v195 = vpop.xlane.xlu0 %194
        %v196 = vsel %vm190, 0.0, %v186
        %v197 = vsel %vm192, %v196, 0.0
        %198 = vadd.xlane.f32.xlu0 %v197
        %v199 = vpop.xlane.xlu0 %198
        %v200 = vmul.f32 %v195, 0.03125
        %v201 = vmul.f32 %v199, 0.03125
        %v202 = vsel %vm190, %v200, %v201
        %v203 = vsub.f32 %v186, %v202
        %v204 = vmul.f32 %v203, %v203
        %v205 = vsel %vm190, %v204, 0.0
        %v206 = vsel %vm192, %v205, 0.0
        %207 = vadd.xlane.f32.xlu0 %v206
        %v208 = vpop.xlane.xlu0 %207
        %v209 = vmul.f32 %v208, 0.03125
        %v210 = vsel %vm190, 0.0, %v204
        %v211 = vsel %vm192, %v210, 0.0
        %212 = vadd.xlane.f32.xlu0 %v211
        %v213 = vpop.xlane.xlu0 %212
        %v214 = vmul.f32 %v213, 0.03125
        %v215 = vsel %vm190, %v209, %v214
        %v216 = vadd.f32 %v215, 1e-05
        %v217 = vrsqrt.pop %v216
        %v218 = vmul.f32 %v203, %v217
        %v219 = vld [vmem:[%s1] sm:$0x1]
        %v221 = vlaneseq
        %v222 = vshrl.u32 %v221, 7
        %v223 = vsub.s32 0, %v222
        %v224 = vrot.slane %v219, %v223
        %v226 = vmul.f32 %v218, %v224
        %v227 = vld [vmem:[%s2] sm:$0x1]
        %v229 = vlaneseq
        %v230 = vshrl.u32 %v229, 7
        %v231 = vsub.s32 0, %v230
        %v232 = vrot.slane %v227, %v231
        %v234 = vadd.f32 %v226, %v232
        %235 = vst.msk [vmem:[%s185] sm:$0xff] %vm192, %v234
        %s236 = sand.u32 %s96, 1
        %s237 = scalar_lea.sflag [#allocation4], %s236
        %s238 = sand.u32 %s96, 1
        %s239 = smul.addr %s238, 8
        %s240 = scalar_lea.vmem [#allocation5], %s239
        // Predicated region
        $region37: #{tpu_custom_call.1} parent=31 // pred_check
          %p241 = pneg %p106
        $region38: #{tpu_custom_call.1} parent=31 // pred_check_branch
          %243 = sbr.rel (%p241) target = $region40
        $region39: #{tpu_custom_call.1} parent=31 // pred_region
          %s245 = ssub.s32 128, 128
          %246 = vsyncadd %s237, %s245
          %s247 = smul.addr %s20, 128
          %s248 = scalar_lea.hbm %s3, %s247
          %s250 = sshll.u32 %s240, 4
          %s251 = int_to_ptr.vmem [resolvable:$true] %s250
          %253 = dma.vmem_to_hbm [thread:$0]  %s251, 128, %s248, %s237
        $region40: #{tpu_custom_call.1} parent=31 // pred_fallthru
          _
      $region32: #{tpu_custom_call.1} parent=5 // pred_fallthru
        _
      %p254 = scmp.le.s32.totalorder 2, %s15
      // Predicated region
      $region41: #{tpu_custom_call.1} parent=5 // pred_check
        %p255 = pneg %p254
      $region42: #{tpu_custom_call.1} parent=5 // pred_check_branch
        %257 = sbr.rel (%p255) target = $region44
      $region43: #{tpu_custom_call.1} parent=5 // pred_region
        %s258 = ssub.s32 %s15, 2
        // Predicated region
        $region45: #{tpu_custom_call.1} parent=43 // pred_check
          %p259 = pneg %p112
        $region46: #{tpu_custom_call.1} parent=43 // pred_check_branch
          %261 = sbr.rel (%p259) target = $region48
        $region47: #{tpu_custom_call.1} parent=43 // pred_region
          %s262 = sand.u32 %s97, 1
          %s263 = scalar_lea.sflag [#allocation4], %s262
          %s264 = sand.u32 %s97, 1
          %s265 = smul.addr %s264, 8
          %s266 = scalar_lea.vmem [#allocation5], %s265
          %267 = dma.done %s263, 128
        $region48: #{tpu_custom_call.1} parent=43 // pred_fallthru
          _
      $region44: #{tpu_custom_call.1} parent=5 // pred_fallthru
        _
    $region6: #{tpu_custom_call.1} parent=1 // loop_footer
      %s19 = sadd.s32 1, %s15
    $region7: #{tpu_custom_call.1} parent=1 // loop_footer_branch
      %14 = sbr.rel target = $region3
    $region8: #{tpu_custom_call.1} parent=1 // loop_exit
      _
    %268 = vsyncpa [#allocation3], 1
    %s269 = scalar_lea.sflag [#allocation3], 1
    %270 = vsyncpa %s269, 1
    %271 = vsyncpa [#allocation4], 1
    %s272 = scalar_lea.sflag [#allocation4], 1
    %273 = vsyncpa %s272, 1

</llo_original>
